<compile_context>
chip_gen: v7x
topology: tpu7x:2x2x1
jax: 0.10.0
libtpu: 0.0.40
codegen_flags: <defaults>
</compile_context>

<pallas_src>
import functools

import jax
import jax.numpy as jnp
from jax.experimental import pallas as pl
from jax.experimental.pallas import tpu as pltpu

VOCAB = 1000
EMBED = 10
OUT = 10
OUT_PAD = 128  # lane-dense output width (last dim padded to one full vreg lane extent)


def _round_up(x, m):
    return ((x + m - 1) // m) * m


def _gather_kernel(ids_ref, ftab_ref, out_ref):
    # ids_ref : SMEM (N_pad,)        int32   token ids (scalar-prefetched)
    # ftab_ref: VMEM (VP, OUT_PAD)   float32 fused table (= table @ W.T + b, padded)
    # out_ref : VMEM (TN, OUT_PAD)   float32 gathered rows for this tile
    tn = out_ref.shape[0]          # static Python int
    base = pl.program_id(0) * tn
    # Unrolled per-row copy: dynamic-sublane read from the table, static-sublane
    # write to the output tile.  Pure load/store traffic; no MXU/VPU work.
    for t in range(tn):
        tok = ids_ref[base + t]
        out_ref[pl.ds(t, 1), :] = ftab_ref[pl.ds(tok, 1), :]


def make_fused_table(table, weight, bias):
    """One-time fold of the Linear into the embedding table (outside the hot path).

    fused[v] = table[v] @ W.T + b, padded to (round_up(VOCAB, 8), OUT_PAD).
    """
    fused = (
        jnp.dot(table, weight.T, precision=jax.lax.Precision.HIGHEST) + bias
    )  # (VOCAB, OUT) f32, exact f32 contraction
    vpad = _round_up(VOCAB, 8)  # 1000 is already sublane-aligned; kept generic
    return jnp.pad(fused, ((0, vpad - VOCAB), (0, OUT_PAD - OUT)))


@functools.partial(jax.jit, static_argnames=("tn_max",))
def distributed_model_forward(x_ids, fused_table, *, tn_max=64):
    """x_ids: (B, S) int32 token ids -> (B, S, OUT) float32."""
    B, S = x_ids.shape
    N = B * S
    vp, outp = fused_table.shape

    # --- Tile the token axis (sublane-aligned, >=2 grid steps when possible) ---
    n8 = _round_up(max(N, 8), 8)
    tn = min(tn_max, n8)
    if n8 > 8 and n8 // tn < 2:           # ensure grid >= 2 so v7x megacore helps
        tn = max(8, _round_up(n8 // 2, 8))
    n_pad = _round_up(n8, tn)

    ids = jnp.zeros((n_pad,), jnp.int32).at[:N].set(
        x_ids.reshape(N).astype(jnp.int32)
    )

    out = pl.pallas_call(
        _gather_kernel,
        out_shape=jax.ShapeDtypeStruct((n_pad, outp), jnp.float32),
        grid_spec=pltpu.PrefetchScalarGridSpec(
            num_scalar_prefetch=1,
            grid=(n_pad // tn,),
            in_specs=[
                # Fused table: grid-invariant, fully VMEM-resident (~0.5 MiB).
                pl.BlockSpec((vp, outp), lambda i, ids: (0, 0)),
            ],
            out_specs=pl.BlockSpec((tn, outp), lambda i, ids: (i, 0)),
        ),
        compiler_params=pltpu.CompilerParams(
            dimension_semantics=("parallel",),
            vmem_limit_bytes=8 * 1024 * 1024,
        ),
    )(ids, fused_table)

    return out[:N, :OUT].reshape(B, S, OUT)


if __name__ == "__main__":
    key = jax.random.PRNGKey(0)
    k_ids, k_tab, k_w, k_b = jax.random.split(key, 4)

    # Small shapes consistent with the module: batch=2, seq=8 token ids.
    B, S = 2, 8
    x_ids = jax.random.randint(k_ids, (B, S), 0, VOCAB, dtype=jnp.int32)

    # Deterministic parameter init (matching PyTorch init distributions in spirit):
    #   nn.Embedding: N(0, 1);  nn.Linear: U(-1/sqrt(in), 1/sqrt(in)).
    table = jax.random.normal(k_tab, (VOCAB, EMBED), dtype=jnp.float32)
    bound = 1.0 / jnp.sqrt(jnp.float32(EMBED))
    weight = jax.random.uniform(k_w, (OUT, EMBED), jnp.float32, -bound, bound)
    bias = jax.random.uniform(k_b, (OUT,), jnp.float32, -bound, bound)

    # One-time fold + pad, hoisted out of the forward path.
    fused = make_fused_table(table, weight, bias)
    jax.block_until_ready(fused)

    y = distributed_model_forward(x_ids, fused)
    jax.block_until_ready(y)

    # Reference check in plain JAX (embedding gather + linear), exact f32 matmul.
    emb = jnp.take(table, x_ids, axis=0)                       # (B, S, EMBED)
    ref = jnp.dot(emb, weight.T, precision=jax.lax.Precision.HIGHEST) + bias

    assert y.shape == (B, S, OUT)
    assert jnp.allclose(y, ref, atol=1e-5, rtol=1e-5), "mismatch vs reference"

    print("KERNEL_OK")
</pallas_src>

<mosaic_0001>
module attributes {stable_mosaic.version = 11 : i64} {
  func.func @_gather_kernel(%arg0: i32, %arg1: memref<16xi32, #tpu.memory_space<smem>>, %arg2: memref<1000x128xf32, #tpu.memory_space<vmem>>, %arg3: memref<8x128xf32, #tpu.memory_space<vmem>>) attributes {dimension_semantics = [#tpu.dimension_semantics<parallel>], iteration_bounds = array<i64: 2>, scalar_prefetch = 1 : i64, scratch_operands = 0 : i64, tpu.core_type = #tpu.core_type<tc>, window_params = [{pipeline_mode = #tpu.pipeline_mode<synchronous>, transform_indices = @transform_0, window_bounds = array<i64: 1000, 128>}, {transform_indices = @transform_1, window_bounds = array<i64: 8, 128>}]} {
    %c8_i32 = arith.constant 8 : i32
    %0 = arith.muli %arg0, %c8_i32 : i32
    %c0_i32 = arith.constant 0 : i32
    %1 = arith.addi %0, %c0_i32 : i32
    %2 = arith.index_cast %1 : i32 to index
    %3 = memref.load %arg1[%2] : memref<16xi32, #tpu.memory_space<smem>>
    %4 = arith.index_cast %3 : i32 to index
    %c0 = arith.constant 0 : index
    %5 = vector.load %arg2[%4, %c0] : memref<1000x128xf32, #tpu.memory_space<vmem>>, vector<1x128xf32>
    %c0_0 = arith.constant 0 : index
    %c0_1 = arith.constant 0 : index
    %6 = vector.load %arg3[%c0_0, %c0_1] : memref<8x128xf32, #tpu.memory_space<vmem>>, vector<1x128xf32>
    tpu.vector_store %arg3[%c0_0, %c0_1], %5 {strides = array<i32>} : memref<8x128xf32, #tpu.memory_space<vmem>>, vector<1x128xf32>,
    %c1_i32 = arith.constant 1 : i32
    %7 = arith.addi %0, %c1_i32 : i32
    %8 = arith.index_cast %7 : i32 to index
    %9 = memref.load %arg1[%8] : memref<16xi32, #tpu.memory_space<smem>>
    %10 = arith.index_cast %9 : i32 to index
    %c0_2 = arith.constant 0 : index
    %11 = vector.load %arg2[%10, %c0_2] : memref<1000x128xf32, #tpu.memory_space<vmem>>, vector<1x128xf32>
    %c1 = arith.constant 1 : index
    %c0_3 = arith.constant 0 : index
    %12 = vector.load %arg3[%c1, %c0_3] : memref<8x128xf32, #tpu.memory_space<vmem>>, vector<1x128xf32>
    tpu.vector_store %arg3[%c1, %c0_3], %11 {strides = array<i32>} : memref<8x128xf32, #tpu.memory_space<vmem>>, vector<1x128xf32>,
    %c2_i32 = arith.constant 2 : i32
    %13 = arith.addi %0, %c2_i32 : i32
    %14 = arith.index_cast %13 : i32 to index
    %15 = memref.load %arg1[%14] : memref<16xi32, #tpu.memory_space<smem>>
    %16 = arith.index_cast %15 : i32 to index
    %c0_4 = arith.constant 0 : index
    %17 = vector.load %arg2[%16, %c0_4] : memref<1000x128xf32, #tpu.memory_space<vmem>>, vector<1x128xf32>
    %c2 = arith.constant 2 : index
    %c0_5 = arith.constant 0 : index
    %18 = vector.load %arg3[%c2, %c0_5] : memref<8x128xf32, #tpu.memory_space<vmem>>, vector<1x128xf32>
    tpu.vector_store %arg3[%c2, %c0_5], %17 {strides = array<i32>} : memref<8x128xf32, #tpu.memory_space<vmem>>, vector<1x128xf32>,
    %c3_i32 = arith.constant 3 : i32
    %19 = arith.addi %0, %c3_i32 : i32
    %20 = arith.index_cast %19 : i32 to index
    %21 = memref.load %arg1[%20] : memref<16xi32, #tpu.memory_space<smem>>
    %22 = arith.index_cast %21 : i32 to index
    %c0_6 = arith.constant 0 : index
    %23 = vector.load %arg2[%22, %c0_6] : memref<1000x128xf32, #tpu.memory_space<vmem>>, vector<1x128xf32>
    %c3 = arith.constant 3 : index
    %c0_7 = arith.constant 0 : index
    %24 = vector.load %arg3[%c3, %c0_7] : memref<8x128xf32, #tpu.memory_space<vmem>>, vector<1x128xf32>
    tpu.vector_store %arg3[%c3, %c0_7], %23 {strides = array<i32>} : memref<8x128xf32, #tpu.memory_space<vmem>>, vector<1x128xf32>,
    %c4_i32 = arith.constant 4 : i32
    %25 = arith.addi %0, %c4_i32 : i32
    %26 = arith.index_cast %25 : i32 to index
    %27 = memref.load %arg1[%26] : memref<16xi32, #tpu.memory_space<smem>>
    %28 = arith.index_cast %27 : i32 to index
    %c0_8 = arith.constant 0 : index
    %29 = vector.load %arg2[%28, %c0_8] : memref<1000x128xf32, #tpu.memory_space<vmem>>, vector<1x128xf32>
    %c4 = arith.constant 4 : index
    %c0_9 = arith.constant 0 : index
    %30 = vector.load %arg3[%c4, %c0_9] : memref<8x128xf32, #tpu.memory_space<vmem>>, vector<1x128xf32>
    tpu.vector_store %arg3[%c4, %c0_9], %29 {strides = array<i32>} : memref<8x128xf32, #tpu.memory_space<vmem>>, vector<1x128xf32>,
    %c5_i32 = arith.constant 5 : i32
    %31 = arith.addi %0, %c5_i32 : i32
    %32 = arith.index_cast %31 : i32 to index
    %33 = memref.load %arg1[%32] : memref<16xi32, #tpu.memory_space<smem>>
    %34 = arith.index_cast %33 : i32 to index
    %c0_10 = arith.constant 0 : index
    %35 = vector.load %arg2[%34, %c0_10] : memref<1000x128xf32, #tpu.memory_space<vmem>>, vector<1x128xf32>
    %c5 = arith.constant 5 : index
    %c0_11 = arith.constant 0 : index
    %36 = vector.load %arg3[%c5, %c0_11] : memref<8x128xf32, #tpu.memory_space<vmem>>, vector<1x128xf32>
    tpu.vector_store %arg3[%c5, %c0_11], %35 {strides = array<i32>} : memref<8x128xf32, #tpu.memory_space<vmem>>, vector<1x128xf32>,
    %c6_i32 = arith.constant 6 : i32
    %37 = arith.addi %0, %c6_i32 : i32
    %38 = arith.index_cast %37 : i32 to index
    %39 = memref.load %arg1[%38] : memref<16xi32, #tpu.memory_space<smem>>
    %40 = arith.index_cast %39 : i32 to index
    %c0_12 = arith.constant 0 : index
    %41 = vector.load %arg2[%40, %c0_12] : memref<1000x128xf32, #tpu.memory_space<vmem>>, vector<1x128xf32>
    %c6 = arith.constant 6 : index
    %c0_13 = arith.constant 0 : index
    %42 = vector.load %arg3[%c6, %c0_13] : memref<8x128xf32, #tpu.memory_space<vmem>>, vector<1x128xf32>
    tpu.vector_store %arg3[%c6, %c0_13], %41 {strides = array<i32>} : memref<8x128xf32, #tpu.memory_space<vmem>>, vector<1x128xf32>,
    %c7_i32 = arith.constant 7 : i32
    %43 = arith.addi %0, %c7_i32 : i32
    %44 = arith.index_cast %43 : i32 to index
    %45 = memref.load %arg1[%44] : memref<16xi32, #tpu.memory_space<smem>>
    %46 = arith.index_cast %45 : i32 to index
    %c0_14 = arith.constant 0 : index
    %47 = vector.load %arg2[%46, %c0_14] : memref<1000x128xf32, #tpu.memory_space<vmem>>, vector<1x128xf32>
    %c7 = arith.constant 7 : index
    %c0_15 = arith.constant 0 : index
    %48 = vector.load %arg3[%c7, %c0_15] : memref<8x128xf32, #tpu.memory_space<vmem>>, vector<1x128xf32>
    tpu.vector_store %arg3[%c7, %c0_15], %47 {strides = array<i32>} : memref<8x128xf32, #tpu.memory_space<vmem>>, vector<1x128xf32>,
    return
  }
  func.func @transform_0(%arg0: i32, %arg1: memref<16xi32, #tpu.memory_space<smem>>) -> (i32, i32) {
    %c0_i32 = arith.constant 0 : i32
    %c0_i32_0 = arith.constant 0 : i32
    %c0_i32_1 = arith.constant 0 : i32
    return %c0_i32, %c0_i32_0 : i32, i32
  }
  func.func @transform_1(%arg0: i32, %arg1: memref<16xi32, #tpu.memory_space<smem>>) -> (i32, i32) {
    %c0_i32 = arith.constant 0 : i32
    %c0_i32_0 = arith.constant 0 : i32
    return %arg0, %c0_i32 : i32, i32
  }
}

</mosaic_0001>

<llo_original>
// kernel: distributed_model_forward.1
$region0: #{distributed_model_forward.1}
  #allocation0 [shape = 'u32[]', space=smem, size = 0x4, offset = 0x4, fixed_abs, tag = 'smem constant byte address 0x4 - core index']
  #allocation1 [shape = 'u32[144,128]{1,0:T(1,128)}', space=vmem, size = 0x12000, scoped, tag = 'internal scratch']
  #allocation2 [shape = 's32[1]{0}', space=sflag, size = 0x4, scoped, tag = 'scoped memory for distributed_model_forward.1']
  #allocation3 [shape = 'u8[512]{0}', space=smem, size = 0x200, scoped, tag = 'prefetched SMEM operand 0']
  %s0 = inlined_call_operand.vmem [shape: s32[16], index: 0, kind: input, shape index: {}]
  %s1 = inlined_call_operand.hbm [shape: f32[1000,128], index: 1, kind: input, shape index: {}]
  %s2 = inlined_call_operand.vmem [shape: f32[16,128], index: 2, kind: output, shape index: {}]
  %s3 = sld [smem:[#allocation0]]
  $region41: #{distributed_model_forward.1} parent=0
    _
  %s5 = ssub.s32 1, %s3
  %s6 = scalar_select 0, %s5, %s3
  %s7 = sshll.u32 %s0, 4
  %s8 = int_to_ptr.vmem [resolvable:$true] %s7
  %10 = dma.vmem_to_smem %s8, 16, [#allocation3], [#allocation2]
  %11 = dma.done [#allocation2], 16
  %12 = sfence
  $region1: #{distributed_model_forward.1} parent=0
    #allocation4 [shape = 'u8[512000]{0}', space=vmem, size = 0x7d000, scoped, tag = 'input window, operand 1, single buffered']
    #allocation5 [shape = 's32[2]{0}', space=sflag, size = 0x8, scoped, tag = 'scoped memory for distributed_model_forward.1']
    %13 = vsyncpa [#allocation5], 0
    loop: start=0, step=1, limit=4
    $region2: #{distributed_model_forward.1} parent=1 // loop_pre_header
      _
    $region3: #{distributed_model_forward.1} parent=1 // loop_header
      %s15 = sphi 0, %s19
      %p16 = scmp.ge.s32.totalorder %s15, 4
      %s23 = sphi 0, %s23
      %s25 = sphi 0, %s23
      %s26 = sphi 0, %s25
      %s40 = sphi 0, %s26
      %s46 = sphi 0, %s48
      %s49 = sphi 0, %s46
      %s50 = sphi 0, %s49
      %s66 = sphi 0, %s50
    $region4: #{distributed_model_forward.1} parent=1 // loop_header_branch
      %18 = sbr.rel (%p16) target = $region8
    $region5: #{distributed_model_forward.1} parent=1 // loop_body
      %s20 = ssub.s32 %s15, 1
      %s21 = ssub.s32 %s15, 2
      %s22 = sadd.s32 %s15, 1
      %s24 = sadd.s32 %s23, 1
      %p27 = scmp.eq.s32.totalorder %s15, 1
      %p28 = scmp.ne.s32.totalorder %s23, %s25
      %p29 = scmp.eq.s32.totalorder %s15, 0
      %p30 = por %p28, %p29
      %p31 = scmp.ne.s32.totalorder %s23, %s25
      %p32 = scmp.eq.s32.totalorder %s20, 1
      %p33 = por %p31, %p32
      %p34 = scmp.ne.s32.totalorder %s25, %s26
      %p35 = scmp.eq.s32.totalorder %s20, 0
      %p36 = por %p34, %p35
      %p37 = scmp.ne.s32.totalorder %s25, %s26
      %p38 = scmp.eq.s32.totalorder %s21, 1
      %p39 = por %p37, %p38
      %p41 = scmp.ne.s32.totalorder %s26, %s40
      %p42 = scmp.eq.s32.totalorder %s21, 0
      %p43 = por %p41, %p42
      %s44 = ssub.s32 %s15, %s22
      %p45 = scmp.eq.s32.totalorder %s44, 0
      %s47 = sadd.s32 %s46, 1
      %s48 = scalar_select %p45, %s46, %s47
      %p51 = pneg %p45
      %p52 = scmp.eq.s32.totalorder %s15, 1
      %p53 = por %p51, %p52
      %p54 = scmp.ne.s32.totalorder %s46, %s49
      %p55 = scmp.eq.s32.totalorder %s15, 0
      %p56 = por %p54, %p55
      %p57 = scmp.ne.s32.totalorder %s46, %s49
      %p58 = scmp.eq.s32.totalorder %s20, 1
      %p59 = por %p57, %p58
      %p60 = scmp.ne.s32.totalorder %s49, %s50
      %p61 = scmp.eq.s32.totalorder %s20, 0
      %p62 = por %p60, %p61
      %p63 = scmp.ne.s32.totalorder %s49, %s50
      %p64 = scmp.eq.s32.totalorder %s21, 1
      %p65 = por %p63, %p64
      %p67 = scmp.ne.s32.totalorder %s50, %s66
      %p68 = scmp.eq.s32.totalorder %s21, 0
      %p69 = por %p67, %p68
      %p70 = scmp.le.s32.totalorder 1, %s15
      %p71 = scmp.lt.s32.totalorder %s15, 3
      %p72 = pnand %p70, %p71
      %p73 = pneg %p72
      // Predicated region
      $region9: #{distributed_model_forward.1} parent=5 // pred_check
        _
      $region10: #{distributed_model_forward.1} parent=5 // pred_check_branch
        %75 = sbr.rel (%p72) target = $region12
      $region11: #{distributed_model_forward.1} parent=5 // pred_region
        %s76 = ssub.s32 %s15, 1
        // Predicated region
        $region13: #{distributed_model_forward.1} parent=11 // pred_check
          %p77 = pneg %p36
        $region14: #{distributed_model_forward.1} parent=11 // pred_check_branch
          %79 = sbr.rel (%p77) target = $region16
        $region15: #{distributed_model_forward.1} parent=11 // pred_region
          %s81 = ssub.s32 16000, 16000
          %82 = vsyncadd [#allocation5], %s81
          %s83 = sshll.u32 [#allocation4], 4
          %s84 = int_to_ptr.vmem [resolvable:$true] %s83
          %89 = dma.hbm_to_vmem [thread:$0]  %s1, 16000, %s84, [#allocation5], 128, 128, 8
        $region16: #{distributed_model_forward.1} parent=11 // pred_fallthru
          _
      $region12: #{distributed_model_forward.1} parent=5 // pred_fallthru
        _
      %p90 = scmp.lt.s32.totalorder %s15, 2
      // Predicated region
      $region17: #{distributed_model_forward.1} parent=5 // pred_check
        %p91 = pneg %p90
      $region18: #{distributed_model_forward.1} parent=5 // pred_check_branch
        %93 = sbr.rel (%p91) target = $region20
      $region19: #{distributed_model_forward.1} parent=5 // pred_region
        _
      $region20: #{distributed_model_forward.1} parent=5 // pred_fallthru
        _
      %p94 = scmp.le.s32.totalorder 1, %s15
      %p95 = scmp.lt.s32.totalorder %s15, 3
      %p96 = pnand %p94, %p95
      %p97 = pneg %p96
      // Predicated region
      $region21: #{distributed_model_forward.1} parent=5 // pred_check
        _
      $region22: #{distributed_model_forward.1} parent=5 // pred_check_branch
        %99 = sbr.rel (%p96) target = $region24
      $region23: #{distributed_model_forward.1} parent=5 // pred_region
        %s100 = ssub.s32 %s15, 1
        // Predicated region
        $region25: #{distributed_model_forward.1} parent=23 // pred_check
          %p101 = pneg %p36
        $region26: #{distributed_model_forward.1} parent=23 // pred_check_branch
          %103 = sbr.rel (%p101) target = $region28
        $region27: #{distributed_model_forward.1} parent=23 // pred_region
          %104 = dma.done [#allocation5], 16000
        $region28: #{distributed_model_forward.1} parent=23 // pred_fallthru
          _
        %p105 = pneg %p36
        %p106 = pneg %p33
        %p107 = pneg %p62
        %p108 = pneg %p59
        %p109 = scmp.lt.s32.totalorder %s20, 1
        %s110 = scalar_select %p109, %s20, 1
        %s111 = smul.addr %s110, 8
        %s112 = scalar_lea.vmem %s2, %s111
        %p113 = scmp.lt.s32.totalorder %s20, 1
        %s114 = scalar_select %p113, %s20, 1
        %s115 = smul.addr %s114, 8
        %s116 = scalar_lea.vmem %s2, %s115
        %s117 = smul.u32 %s20, 8
        %s118 = sld [smem:[#allocation3 + %s117]]
        %s119 = scalar_lea.vmem [#allocation4], %s118
        %v120 = vld [vmem:[%s119] sm:$0x1]
        %121 = vst [vmem:[%s116] sm:$0x1] %v120
        %s122 = sadd.s32 %s117, 1
        %s123 = sld [smem:[#allocation3 + %s122]]
        %s124 = scalar_lea.vmem [#allocation4], %s123
        %v125 = vld [vmem:[%s124] sm:$0x1]
        %126 = vst [vmem:[%s116 + $0x1] sm:$0x1] %v125
        %s127 = sadd.s32 %s117, 2
        %s128 = sld [smem:[#allocation3 + %s127]]
        %s129 = scalar_lea.vmem [#allocation4], %s128
        %v130 = vld [vmem:[%s129] sm:$0x1]
        %131 = vst [vmem:[%s116 + $0x2] sm:$0x1] %v130
        %s132 = sadd.s32 %s117, 3
        %s133 = sld [smem:[#allocation3 + %s132]]
        %s134 = scalar_lea.vmem [#allocation4], %s133
        %v135 = vld [vmem:[%s134] sm:$0x1]
        %136 = vst [vmem:[%s116 + $0x3] sm:$0x1] %v135
        %s137 = sadd.s32 %s117, 4
        %s138 = sld [smem:[#allocation3 + %s137]]
        %s139 = scalar_lea.vmem [#allocation4], %s138
        %v140 = vld [vmem:[%s139] sm:$0x1]
        %141 = vst [vmem:[%s116 + $0x4] sm:$0x1] %v140
        %s142 = sadd.s32 %s117, 5
        %s143 = sld [smem:[#allocation3 + %s142]]
        %s144 = scalar_lea.vmem [#allocation4], %s143
        %v145 = vld [vmem:[%s144] sm:$0x1]
        %146 = vst [vmem:[%s116 + $0x5] sm:$0x1] %v145
        %s147 = sadd.s32 %s117, 6
        %s148 = sld [smem:[#allocation3 + %s147]]
        %s149 = scalar_lea.vmem [#allocation4], %s148
        %v150 = vld [vmem:[%s149] sm:$0x1]
        %151 = vst [vmem:[%s116 + $0x6] sm:$0x1] %v150
        %s152 = sadd.s32 %s117, 7
        %s153 = sld [smem:[#allocation3 + %s152]]
        %s154 = scalar_lea.vmem [#allocation4], %s153
        %v155 = vld [vmem:[%s154] sm:$0x1]
        %156 = vst [vmem:[%s116 + $0x7] sm:$0x1] %v155
        %p157 = scmp.lt.s32.totalorder %s20, 1
        %s158 = scalar_select %p157, %s20, 1
        %s159 = smul.addr %s158, 8
        %s160 = scalar_lea.vmem %s2, %s159
        // Predicated region
        $region29: #{distributed_model_forward.1} parent=23 // pred_check
          %p161 = pneg %p59
        $region30: #{distributed_model_forward.1} parent=23 // pred_check_branch
          %163 = sbr.rel (%p161) target = $region32
        $region31: #{distributed_model_forward.1} parent=23 // pred_region
          _
        $region32: #{distributed_model_forward.1} parent=23 // pred_fallthru
          _
      $region24: #{distributed_model_forward.1} parent=5 // pred_fallthru
        _
      %p164 = scmp.le.s32.totalorder 2, %s15
      // Predicated region
      $region33: #{distributed_model_forward.1} parent=5 // pred_check
        %p165 = pneg %p164
      $region34: #{distributed_model_forward.1} parent=5 // pred_check_branch
        %167 = sbr.rel (%p165) target = $region36
      $region35: #{distributed_model_forward.1} parent=5 // pred_region
        %s168 = ssub.s32 %s15, 2
        // Predicated region
        $region37: #{distributed_model_forward.1} parent=35 // pred_check
          %p169 = pneg %p65
        $region38: #{distributed_model_forward.1} parent=35 // pred_check_branch
          %171 = sbr.rel (%p169) target = $region40
        $region39: #{distributed_model_forward.1} parent=35 // pred_region
          %p172 = scmp.lt.s32.totalorder %s21, 1
          %s173 = scalar_select %p172, %s21, 1
          %s174 = smul.addr %s173, 8
          %s175 = scalar_lea.vmem %s2, %s174
        $region40: #{distributed_model_forward.1} parent=35 // pred_fallthru
          _
      $region36: #{distributed_model_forward.1} parent=5 // pred_fallthru
        _
    $region6: #{distributed_model_forward.1} parent=1 // loop_footer
      %s19 = sadd.s32 1, %s15
    $region7: #{distributed_model_forward.1} parent=1 // loop_footer_branch
      %14 = sbr.rel target = $region3
    $region8: #{distributed_model_forward.1} parent=1 // loop_exit
      _
    %176 = vsyncpa [#allocation5], 1
    %s177 = scalar_lea.sflag [#allocation5], 1
    %178 = vsyncpa %s177, 1

</llo_original>
